<compile_context>
chip_gen: v7x
topology: tpu7x:2x2x1
jax: 0.10.0
libtpu: 0.0.40
codegen_flags: <defaults>
</compile_context>

<pallas_src>
import math

import jax
import jax.numpy as jnp
from jax.experimental import pallas as pl
from jax.experimental.pallas import tpu as pltpu

INPUT_SIZE = 28 * 28      # 784
NUM_HIDDEN = 128
NUM_CLASSES = 10
PADDED_CLASSES = 128      # lane-dense output width (sliced back to 10 outside)


def _round_up(x, m):
  return ((x + m - 1) // m) * m


def _mlp_kernel(x_ref, w1_ref, b1_ref, w2_ref, b2_ref, o_ref):
  # x_ref:  (TB, 784)  bf16      w1_ref: (784, 128) bf16   b1_ref: (1, 128) f32
  # w2_ref: (128, 128) bf16 (cols 10..127 zero)            b2_ref: (1, 128) f32
  # o_ref:  (TB, 128)  f32
  # Layer 1 on the MXU: bf16 inputs, f32 accumulation.
  h = jnp.dot(x_ref[...], w1_ref[...],
              preferred_element_type=jnp.float32) + b1_ref[...]
  # Exact sigmoid (EUP exp + exact reciprocal); EUP/VALU have slack here.
  h = jax.nn.sigmoid(h)
  # Layer 2 on the MXU (zero-padded output lanes are free on the MXU).
  logits = jnp.dot(h.astype(jnp.bfloat16), w2_ref[...],
                   preferred_element_type=jnp.float32) + b2_ref[...]
  o_ref[...] = logits


def prepare_params(w1, b1, w2, b2):
  """One-time parameter prep (hoisted out of the per-call forward wrapper).

  Casts matmul weights to bf16 and zero-pads layer-2 weights/bias to 128
  output lanes so the kernel's output store is lane-dense.
  """
  w1_bf16 = w1.astype(jnp.bfloat16)                       # (784, 128)
  b1_2d = b1.reshape(1, NUM_HIDDEN).astype(jnp.float32)   # (1, 128)
  w2_p = jnp.zeros((NUM_HIDDEN, PADDED_CLASSES), jnp.bfloat16)
  w2_p = w2_p.at[:, :NUM_CLASSES].set(w2.astype(jnp.bfloat16))
  b2_p = jnp.zeros((1, PADDED_CLASSES), jnp.float32)
  b2_p = b2_p.at[:, :NUM_CLASSES].set(b2.astype(jnp.float32))
  return w1_bf16, b1_2d, w2_p, b2_p


def _choose_batch_tiling(B, block_b):
  """Balanced batch tiles: >=2 grid steps (v7x dual-TC / pipelining), tile size
  a multiple of 16 (bf16 sublanes), minimal zero-row padding."""
  num_tiles = max(2, pl.cdiv(B, block_b))
  tb = _round_up(pl.cdiv(B, num_tiles), 16)
  bp = num_tiles * tb
  return tb, bp, num_tiles


def mnist_mlp_forward(x_nchw, prepared_params, *, block_b=2048):
  """Forward pass matching _Model.forward: sigmoid(x@W1+b1)@W2+b2.

  Args:
    x_nchw: (B, 1, 28, 28) float32 (NCHW, like the PyTorch workload).
    prepared_params: output of prepare_params(w1, b1, w2, b2).
  Returns:
    logits: (B, 10) float32.
  """
  w1_bf16, b1_2d, w2_p, b2_p = prepared_params
  B = x_nchw.shape[0]
  # == torch x.view(B, -1); stream the dominant input as bf16.
  x = x_nchw.reshape(B, -1).astype(jnp.bfloat16)

  tb, bp, num_tiles = _choose_batch_tiling(B, block_b)
  if bp != B:
    x = jnp.pad(x, ((0, bp - B), (0, 0)))

  grid = (num_tiles,)
  cost = pl.CostEstimate(
      flops=2 * bp * (INPUT_SIZE * NUM_HIDDEN + NUM_HIDDEN * PADDED_CLASSES),
      transcendentals=bp * NUM_HIDDEN,
      bytes_accessed=(bp * INPUT_SIZE * 2                      # x (bf16)
                      + bp * PADDED_CLASSES * 4                # out (f32)
                      + INPUT_SIZE * NUM_HIDDEN * 2            # w1 (bf16)
                      + NUM_HIDDEN * PADDED_CLASSES * 2        # w2 (bf16)
                      + NUM_HIDDEN * 4 + PADDED_CLASSES * 4),  # biases
  )

  out_padded = pl.pallas_call(
      _mlp_kernel,
      out_shape=jax.ShapeDtypeStruct((bp, PADDED_CLASSES), jnp.float32),
      grid=grid,
      in_specs=[
          # x streams: new batch tile per grid step (double-buffered).
          pl.BlockSpec((tb, INPUT_SIZE), lambda i: (i, 0)),
          # Weights / biases: constant block index -> stay VMEM-resident.
          pl.BlockSpec((INPUT_SIZE, NUM_HIDDEN), lambda i: (0, 0)),
          pl.BlockSpec((1, NUM_HIDDEN), lambda i: (0, 0)),
          pl.BlockSpec((NUM_HIDDEN, PADDED_CLASSES), lambda i: (0, 0)),
          pl.BlockSpec((1, PADDED_CLASSES), lambda i: (0, 0)),
      ],
      out_specs=pl.BlockSpec((tb, PADDED_CLASSES), lambda i: (i, 0)),
      compiler_params=pltpu.CompilerParams(
          # Independent batch tiles -> shard across v7x's two TensorCores.
          dimension_semantics=("parallel",)),
      cost_estimate=cost,
  )(x, w1_bf16, b1_2d, w2_p, b2_p)

  # TODO(synk): downstream consumers (e.g. argmax) could read the padded
  # (bp, 128) buffer directly and skip this slice copy.
  return out_padded[:B, :NUM_CLASSES]


def init_params(key):
  """Deterministic init mirroring torch.nn.Linear defaults:
  U(-1/sqrt(fan_in), 1/sqrt(fan_in)) for both weight and bias."""
  k1, k2, k3, k4 = jax.random.split(key, 4)
  bound1 = 1.0 / math.sqrt(INPUT_SIZE)
  bound2 = 1.0 / math.sqrt(NUM_HIDDEN)
  w1 = jax.random.uniform(k1, (INPUT_SIZE, NUM_HIDDEN), jnp.float32,
                          -bound1, bound1)
  b1 = jax.random.uniform(k2, (NUM_HIDDEN,), jnp.float32, -bound1, bound1)
  w2 = jax.random.uniform(k3, (NUM_HIDDEN, NUM_CLASSES), jnp.float32,
                          -bound2, bound2)
  b2 = jax.random.uniform(k4, (NUM_CLASSES,), jnp.float32, -bound2, bound2)
  return w1, b1, w2, b2


if __name__ == "__main__":
  key = jax.random.PRNGKey(0)
  k_x, k_p = jax.random.split(key)

  batch = 8
  x = jax.random.normal(k_x, (batch, 1, 28, 28), jnp.float32)  # NCHW like torch
  w1, b1, w2, b2 = init_params(k_p)
  prepared = prepare_params(w1, b1, w2, b2)   # one-time param prep

  logits = mnist_mlp_forward(x, prepared)
  logits = jax.block_until_ready(logits)

  # Pure-JAX f32 reference check (tolerance accounts for the bf16 MXU inputs;
  # the sigmoid itself is exact).
  x_flat = x.reshape(batch, -1)
  ref = jax.nn.sigmoid(x_flat @ w1 + b1) @ w2 + b2
  assert logits.shape == (batch, NUM_CLASSES)
  assert jnp.allclose(logits, ref, atol=2e-2, rtol=2e-2), (
      f"max abs diff = {jnp.max(jnp.abs(logits - ref))}")

  print("KERNEL_OK")
</pallas_src>

<mosaic_0001>
module attributes {stable_mosaic.version = 11 : i64} {
  func.func @_mlp_kernel(%arg0: i32, %arg1: memref<16x784xbf16, #tpu.memory_space<vmem>>, %arg2: memref<784x128xbf16, #tpu.memory_space<vmem>>, %arg3: memref<1x128xf32, #tpu.memory_space<vmem>>, %arg4: memref<128x128xbf16, #tpu.memory_space<vmem>>, %arg5: memref<1x128xf32, #tpu.memory_space<vmem>>, %arg6: memref<16x128xf32, #tpu.memory_space<vmem>>) attributes {dimension_semantics = [#tpu.dimension_semantics<parallel>], iteration_bounds = array<i64: 2>, scalar_prefetch = 0 : i64, scratch_operands = 0 : i64, tpu.core_type = #tpu.core_type<tc>, window_params = [{transform_indices = @transform_0, window_bounds = array<i64: 16, 784>}, {pipeline_mode = #tpu.pipeline_mode<synchronous>, transform_indices = @transform_1, window_bounds = array<i64: 784, 128>}, {pipeline_mode = #tpu.pipeline_mode<synchronous>, transform_indices = @transform_2, window_bounds = array<i64: 1, 128>}, {pipeline_mode = #tpu.pipeline_mode<synchronous>, transform_indices = @transform_3, window_bounds = array<i64: 128, 128>}, {pipeline_mode = #tpu.pipeline_mode<synchronous>, transform_indices = @transform_4, window_bounds = array<i64: 1, 128>}, {transform_indices = @transform_5, window_bounds = array<i64: 16, 128>}]} {
    %c0 = arith.constant 0 : index
    %c0_0 = arith.constant 0 : index
    %0 = vector.load %arg1[%c0, %c0_0] : memref<16x784xbf16, #tpu.memory_space<vmem>>, vector<16x784xbf16>
    %c0_1 = arith.constant 0 : index
    %c0_2 = arith.constant 0 : index
    %1 = vector.load %arg2[%c0_1, %c0_2] : memref<784x128xbf16, #tpu.memory_space<vmem>>, vector<784x128xbf16>
    %cst = arith.constant dense<0.000000e+00> : vector<16x128xf32>
    %2 = tpu.matmul %0, %1, %cst {dimension_numbers = #tpu.dot_dimension_numbers<[1], [0], [0], [1], [0, 0, 1, 1], [], []>} : vector<16x784xbf16>, vector<784x128xbf16>, vector<16x128xf32> -> vector<16x128xf32>
    %c0_3 = arith.constant 0 : index
    %c0_4 = arith.constant 0 : index
    %3 = vector.load %arg3[%c0_3, %c0_4] : memref<1x128xf32, #tpu.memory_space<vmem>>, vector<1x128xf32>
    %4 = vector.broadcast %3 : vector<1x128xf32> to vector<16x128xf32>
    %5 = arith.addf %2, %4 : vector<16x128xf32>
    %6 = arith.negf %5 : vector<16x128xf32>
    %7 = math.exp %6 : vector<16x128xf32>
    %cst_5 = arith.constant 1.000000e+00 : f32
    %8 = vector.broadcast %cst_5 : f32 to vector<16x128xf32>
    %9 = arith.addf %8, %7 : vector<16x128xf32>
    %10 = arith.divf %8, %9 : vector<16x128xf32>
    %11 = arith.truncf %10 : vector<16x128xf32> to vector<16x128xbf16>
    %c0_6 = arith.constant 0 : index
    %c0_7 = arith.constant 0 : index
    %12 = vector.load %arg4[%c0_6, %c0_7] : memref<128x128xbf16, #tpu.memory_space<vmem>>, vector<128x128xbf16>
    %cst_8 = arith.constant dense<0.000000e+00> : vector<16x128xf32>
    %13 = tpu.matmul %11, %12, %cst_8 {dimension_numbers = #tpu.dot_dimension_numbers<[1], [0], [0], [1], [0, 0, 1, 1], [], []>} : vector<16x128xbf16>, vector<128x128xbf16>, vector<16x128xf32> -> vector<16x128xf32>
    %c0_9 = arith.constant 0 : index
    %c0_10 = arith.constant 0 : index
    %14 = vector.load %arg5[%c0_9, %c0_10] : memref<1x128xf32, #tpu.memory_space<vmem>>, vector<1x128xf32>
    %15 = vector.broadcast %14 : vector<1x128xf32> to vector<16x128xf32>
    %16 = arith.addf %13, %15 : vector<16x128xf32>
    %c0_11 = arith.constant 0 : index
    %c0_12 = arith.constant 0 : index
    %17 = vector.load %arg6[%c0_11, %c0_12] : memref<16x128xf32, #tpu.memory_space<vmem>>, vector<16x128xf32>
    tpu.vector_store %arg6[%c0_11, %c0_12], %16 {strides = array<i32>} : memref<16x128xf32, #tpu.memory_space<vmem>>, vector<16x128xf32>,
    return
  }
  func.func @transform_0(%arg0: i32) -> (i32, i32) {
    %c0_i32 = arith.constant 0 : i32
    %c0_i32_0 = arith.constant 0 : i32
    return %arg0, %c0_i32 : i32, i32
  }
  func.func @transform_1(%arg0: i32) -> (i32, i32) {
    %c0_i32 = arith.constant 0 : i32
    %c0_i32_0 = arith.constant 0 : i32
    %c0_i32_1 = arith.constant 0 : i32
    return %c0_i32, %c0_i32_0 : i32, i32
  }
  func.func @transform_2(%arg0: i32) -> (i32, i32) {
    %c0_i32 = arith.constant 0 : i32
    %c0_i32_0 = arith.constant 0 : i32
    %c0_i32_1 = arith.constant 0 : i32
    return %c0_i32, %c0_i32_0 : i32, i32
  }
  func.func @transform_3(%arg0: i32) -> (i32, i32) {
    %c0_i32 = arith.constant 0 : i32
    %c0_i32_0 = arith.constant 0 : i32
    %c0_i32_1 = arith.constant 0 : i32
    return %c0_i32, %c0_i32_0 : i32, i32
  }
  func.func @transform_4(%arg0: i32) -> (i32, i32) {
    %c0_i32 = arith.constant 0 : i32
    %c0_i32_0 = arith.constant 0 : i32
    %c0_i32_1 = arith.constant 0 : i32
    return %c0_i32, %c0_i32_0 : i32, i32
  }
  func.func @transform_5(%arg0: i32) -> (i32, i32) {
    %c0_i32 = arith.constant 0 : i32
    %c0_i32_0 = arith.constant 0 : i32
    return %arg0, %c0_i32 : i32, i32
  }
}

</mosaic_0001>

<llo_original>
// kernel: tpu_custom_call.1
$region0: #{tpu_custom_call.1}
  #allocation0 [shape = 'u32[]', space=smem, size = 0x4, offset = 0x4, fixed_abs, tag = 'smem constant byte address 0x4 - core index']
  #allocation1 [shape = 'u32[144,128]{1,0:T(1,128)}', space=vmem, size = 0x12000, scoped, tag = 'internal scratch']
  %s0 = inlined_call_operand.hbm [shape: bf16[32,784], index: 0, kind: input, shape index: {}]
  %s1 = inlined_call_operand.hbm [shape: bf16[784,128], index: 1, kind: input, shape index: {}]
  %s2 = inlined_call_operand.vmem [shape: f32[1,128], index: 2, kind: input, shape index: {}]
  %s3 = inlined_call_operand.hbm [shape: bf16[128,128], index: 3, kind: input, shape index: {}]
  %s4 = inlined_call_operand.vmem [shape: f32[1,128], index: 4, kind: input, shape index: {}]
  %s5 = inlined_call_operand.hbm [shape: f32[32,128], index: 5, kind: output, shape index: {}]
  %s6 = sld [smem:[#allocation0]]
  $region65: #{tpu_custom_call.1} parent=0
    _
  %s8 = ssub.s32 1, %s6
  %s9 = scalar_select 0, %s8, %s6
  $region1: #{tpu_custom_call.1} parent=0
    #allocation2 [shape = 'u8[57344]{0}', space=vmem, size = 0xe000, scoped, tag = 'input window, operand 0']
    #allocation3 [shape = 's32[2]{0}', space=sflag, size = 0x8, scoped, tag = 'scoped memory for tpu_custom_call.1']
    #allocation4 [shape = 's32[2]{0}', space=sflag, size = 0x8, scoped, tag = 'scoped memory for tpu_custom_call.1']
    #allocation5 [shape = 'u8[200704]{0}', space=vmem, size = 0x31000, scoped, tag = 'input window, operand 1, single buffered']
    #allocation6 [shape = 's32[1]{0}', space=sflag, size = 0x4, scoped, tag = 'scoped memory for tpu_custom_call.1']
    #allocation7 [shape = 'u8[32768]{0}', space=vmem, size = 0x8000, scoped, tag = 'input window, operand 3, single buffered']
    #allocation8 [shape = 'u8[16384]{0}', space=vmem, size = 0x4000, scoped, tag = 'output window, operand 0']
    %10 = vsyncpa [#allocation3], 0
    %s11 = scalar_lea.sflag [#allocation3], 1
    %12 = vsyncpa %s11, 0
    %13 = vsyncpa [#allocation6], 0
    %14 = vsyncpa [#allocation4], 0
    %s15 = scalar_lea.sflag [#allocation4], 1
    %16 = vsyncpa %s15, 0
    loop: start=0, step=1, limit=4
    $region2: #{tpu_custom_call.1} parent=1 // loop_pre_header
      _
    $region3: #{tpu_custom_call.1} parent=1 // loop_header
      %s18 = sphi 0, %s22
      %p19 = scmp.ge.s32.totalorder %s18, 4
      %s28 = sphi 0, %s30
      %s31 = sphi 0, %s28
      %s32 = sphi 0, %s31
      %s48 = sphi 0, %s32
      %s52 = sphi 0, %s52
      %s54 = sphi 0, %s52
      %s55 = sphi 0, %s54
      %s69 = sphi 0, %s55
      %s73 = sphi 0, %s73
      %s75 = sphi 0, %s73
      %s76 = sphi 0, %s75
      %s90 = sphi 0, %s76
      %s94 = sphi 0, %s94
      %s96 = sphi 0, %s94
      %s97 = sphi 0, %s96
      %s111 = sphi 0, %s97
      %s115 = sphi 0, %s115
      %s117 = sphi 0, %s115
      %s118 = sphi 0, %s117
      %s132 = sphi 0, %s118
      %s138 = sphi 0, %s140
      %s141 = sphi 0, %s138
      %s142 = sphi 0, %s141
      %s158 = sphi 0, %s142
    $region4: #{tpu_custom_call.1} parent=1 // loop_header_branch
      %21 = sbr.rel (%p19) target = $region8
    $region5: #{tpu_custom_call.1} parent=1 // loop_body
      %s23 = ssub.s32 %s18, 1
      %s24 = ssub.s32 %s18, 2
      %s25 = sadd.s32 %s18, 1
      %s26 = ssub.s32 %s18, %s25
      %p27 = scmp.eq.s32.totalorder %s26, 0
      %s29 = sadd.s32 %s28, 1
      %s30 = scalar_select %p27, %s28, %s29
      %p33 = pneg %p27
      %p34 = scmp.eq.s32.totalorder %s18, 1
      %p35 = por %p33, %p34
      %p36 = scmp.ne.s32.totalorder %s28, %s31
      %p37 = scmp.eq.s32.totalorder %s18, 0
      %p38 = por %p36, %p37
      %p39 = scmp.ne.s32.totalorder %s28, %s31
      %p40 = scmp.eq.s32.totalorder %s23, 1
      %p41 = por %p39, %p40
      %p42 = scmp.ne.s32.totalorder %s31, %s32
      %p43 = scmp.eq.s32.totalorder %s23, 0
      %p44 = por %p42, %p43
      %p45 = scmp.ne.s32.totalorder %s31, %s32
      %p46 = scmp.eq.s32.totalorder %s24, 1
      %p47 = por %p45, %p46
      %p49 = scmp.ne.s32.totalorder %s32, %s48
      %p50 = scmp.eq.s32.totalorder %s24, 0
      %p51 = por %p49, %p50
      %s53 = sadd.s32 %s52, 1
      %p56 = scmp.eq.s32.totalorder %s18, 1
      %p57 = scmp.ne.s32.totalorder %s52, %s54
      %p58 = scmp.eq.s32.totalorder %s18, 0
      %p59 = por %p57, %p58
      %p60 = scmp.ne.s32.totalorder %s52, %s54
      %p61 = scmp.eq.s32.totalorder %s23, 1
      %p62 = por %p60, %p61
      %p63 = scmp.ne.s32.totalorder %s54, %s55
      %p64 = scmp.eq.s32.totalorder %s23, 0
      %p65 = por %p63, %p64
      %p66 = scmp.ne.s32.totalorder %s54, %s55
      %p67 = scmp.eq.s32.totalorder %s24, 1
      %p68 = por %p66, %p67
      %p70 = scmp.ne.s32.totalorder %s55, %s69
      %p71 = scmp.eq.s32.totalorder %s24, 0
      %p72 = por %p70, %p71
      %s74 = sadd.s32 %s73, 1
      %p77 = scmp.eq.s32.totalorder %s18, 1
      %p78 = scmp.ne.s32.totalorder %s73, %s75
      %p79 = scmp.eq.s32.totalorder %s18, 0
      %p80 = por %p78, %p79
      %p81 = scmp.ne.s32.totalorder %s73, %s75
      %p82 = scmp.eq.s32.totalorder %s23, 1
      %p83 = por %p81, %p82
      %p84 = scmp.ne.s32.totalorder %s75, %s76
      %p85 = scmp.eq.s32.totalorder %s23, 0
      %p86 = por %p84, %p85
      %p87 = scmp.ne.s32.totalorder %s75, %s76
      %p88 = scmp.eq.s32.totalorder %s24, 1
      %p89 = por %p87, %p88
      %p91 = scmp.ne.s32.totalorder %s76, %s90
      %p92 = scmp.eq.s32.totalorder %s24, 0
      %p93 = por %p91, %p92
      %s95 = sadd.s32 %s94, 1
      %p98 = scmp.eq.s32.totalorder %s18, 1
      %p99 = scmp.ne.s32.totalorder %s94, %s96
      %p100 = scmp.eq.s32.totalorder %s18, 0
      %p101 = por %p99, %p100
      %p102 = scmp.ne.s32.totalorder %s94, %s96
      %p103 = scmp.eq.s32.totalorder %s23, 1
      %p104 = por %p102, %p103
      %p105 = scmp.ne.s32.totalorder %s96, %s97
      %p106 = scmp.eq.s32.totalorder %s23, 0
      %p107 = por %p105, %p106
      %p108 = scmp.ne.s32.totalorder %s96, %s97
      %p109 = scmp.eq.s32.totalorder %s24, 1
      %p110 = por %p108, %p109
      %p112 = scmp.ne.s32.totalorder %s97, %s111
      %p113 = scmp.eq.s32.totalorder %s24, 0
      %p114 = por %p112, %p113
      %s116 = sadd.s32 %s115, 1
      %p119 = scmp.eq.s32.totalorder %s18, 1
      %p120 = scmp.ne.s32.totalorder %s115, %s117
      %p121 = scmp.eq.s32.totalorder %s18, 0
      %p122 = por %p120, %p121
      %p123 = scmp.ne.s32.totalorder %s115, %s117
      %p124 = scmp.eq.s32.totalorder %s23, 1
      %p125 = por %p123, %p124
      %p126 = scmp.ne.s32.totalorder %s117, %s118
      %p127 = scmp.eq.s32.totalorder %s23, 0
      %p128 = por %p126, %p127
      %p129 = scmp.ne.s32.totalorder %s117, %s118
      %p130 = scmp.eq.s32.totalorder %s24, 1
      %p131 = por %p129, %p130
      %p133 = scmp.ne.s32.totalorder %s118, %s132
      %p134 = scmp.eq.s32.totalorder %s24, 0
      %p135 = por %p133, %p134
      %s136 = ssub.s32 %s18, %s25
      %p137 = scmp.eq.s32.totalorder %s136, 0
      %s139 = sadd.s32 %s138, 1
      %s140 = scalar_select %p137, %s138, %s139
      %p143 = pneg %p137
      %p144 = scmp.eq.s32.totalorder %s18, 1
      %p145 = por %p143, %p144
      %p146 = scmp.ne.s32.totalorder %s138, %s141
      %p147 = scmp.eq.s32.totalorder %s18, 0
      %p148 = por %p146, %p147
      %p149 = scmp.ne.s32.totalorder %s138, %s141
      %p150 = scmp.eq.s32.totalorder %s23, 1
      %p151 = por %p149, %p150
      %p152 = scmp.ne.s32.totalorder %s141, %s142
      %p153 = scmp.eq.s32.totalorder %s23, 0
      %p154 = por %p152, %p153
      %p155 = scmp.ne.s32.totalorder %s141, %s142
      %p156 = scmp.eq.s32.totalorder %s24, 1
      %p157 = por %p155, %p156
      %p159 = scmp.ne.s32.totalorder %s142, %s158
      %p160 = scmp.eq.s32.totalorder %s24, 0
      %p161 = por %p159, %p160
      %p162 = scmp.le.s32.totalorder 1, %s18
      %p163 = scmp.lt.s32.totalorder %s18, 3
      %p164 = pnand %p162, %p163
      %p165 = pneg %p164
      // Predicated region
      $region9: #{tpu_custom_call.1} parent=5 // pred_check
        _
      $region10: #{tpu_custom_call.1} parent=5 // pred_check_branch
        %167 = sbr.rel (%p164) target = $region12
      $region11: #{tpu_custom_call.1} parent=5 // pred_region
        %s168 = ssub.s32 %s18, 1
        // Predicated region
        $region13: #{tpu_custom_call.1} parent=11 // pred_check
          %p169 = pneg %p65
        $region14: #{tpu_custom_call.1} parent=11 // pred_check_branch
          %171 = sbr.rel (%p169) target = $region16
        $region15: #{tpu_custom_call.1} parent=11 // pred_region
          %s173 = ssub.s32 6272, 6272
          %174 = vsyncadd [#allocation6], %s173
          %s175 = sshll.u32 [#allocation5], 4
          %s176 = int_to_ptr.vmem [resolvable:$true] %s175
          %181 = dma.hbm_to_vmem [thread:$0]  %s1, 6272, %s176, [#allocation6], 64, 64, 4
        $region16: #{tpu_custom_call.1} parent=11 // pred_fallthru
          _
        // Predicated region
        $region17: #{tpu_custom_call.1} parent=11 // pred_check
          %p182 = pneg %p86
        $region18: #{tpu_custom_call.1} parent=11 // pred_check_branch
          %184 = sbr.rel (%p182) target = $region20
        $region19: #{tpu_custom_call.1} parent=11 // pred_region
          _
        $region20: #{tpu_custom_call.1} parent=11 // pred_fallthru
          _
        // Predicated region
        $region21: #{tpu_custom_call.1} parent=11 // pred_check
          %p185 = pneg %p107
        $region22: #{tpu_custom_call.1} parent=11 // pred_check_branch
          %187 = sbr.rel (%p185) target = $region24
        $region23: #{tpu_custom_call.1} parent=11 // pred_region
          %s189 = ssub.s32 1024, 1024
          %190 = vsyncadd [#allocation6], %s189
          %s191 = sshll.u32 [#allocation7], 4
          %s192 = int_to_ptr.vmem [resolvable:$true] %s191
          %197 = dma.hbm_to_vmem [thread:$0]  %s3, 1024, %s192, [#allocation6], 64, 64, 4
        $region24: #{tpu_custom_call.1} parent=11 // pred_fallthru
          _
        // Predicated region
        $region25: #{tpu_custom_call.1} parent=11 // pred_check
          %p198 = pneg %p128
        $region26: #{tpu_custom_call.1} parent=11 // pred_check_branch
          %200 = sbr.rel (%p198) target = $region28
        $region27: #{tpu_custom_call.1} parent=11 // pred_region
          _
        $region28: #{tpu_custom_call.1} parent=11 // pred_fallthru
          _
      $region12: #{tpu_custom_call.1} parent=5 // pred_fallthru
        _
      %p201 = scmp.lt.s32.totalorder %s18, 2
      // Predicated region
      $region29: #{tpu_custom_call.1} parent=5 // pred_check
        %p202 = pneg %p201
      $region30: #{tpu_custom_call.1} parent=5 // pred_check_branch
        %204 = sbr.rel (%p202) target = $region32
      $region31: #{tpu_custom_call.1} parent=5 // pred_region
        // Predicated region
        $region33: #{tpu_custom_call.1} parent=31 // pred_check
          %p205 = pneg %p38
        $region34: #{tpu_custom_call.1} parent=31 // pred_check_branch
          %207 = sbr.rel (%p205) target = $region36
        $region35: #{tpu_custom_call.1} parent=31 // pred_region
          %s208 = sand.u32 %s28, 1
          %s209 = scalar_lea.sflag [#allocation3], %s208
          %s210 = sand.u32 %s28, 1
          %s211 = smul.addr %s210, 56
          %s212 = scalar_lea.vmem [#allocation2], %s211
          %s213 = smul.u32 2, %s18
          %s215 = ssub.s32 896, 896
          %216 = vsyncadd %s209, %s215
          %s217 = smul.addr %s213, 7
          %s218 = smul.addr %s217, 64
          %s219 = scalar_lea.hbm %s0, %s218
          %s220 = sshll.u32 %s212, 4
          %s221 = int_to_ptr.vmem [resolvable:$true] %s220
          %226 = dma.hbm_to_vmem [thread:$0]  %s219, 896, %s221, %s209, 448, 448, 28
        $region36: #{tpu_custom_call.1} parent=31 // pred_fallthru
          _
      $region32: #{tpu_custom_call.1} parent=5 // pred_fallthru
        _
      %p227 = scmp.le.s32.totalorder 1, %s18
      %p228 = scmp.lt.s32.totalorder %s18, 3
      %p229 = pnand %p227, %p228
      %p230 = pneg %p229
      // Predicated region
      $region37: #{tpu_custom_call.1} parent=5 // pred_check
        _
      $region38: #{tpu_custom_call.1} parent=5 // pred_check_branch
        %232 = sbr.rel (%p229) target = $region40
      $region39: #{tpu_custom_call.1} parent=5 // pred_region
        %s233 = ssub.s32 %s18, 1
        %s234 = sand.u32 %s31, 1
        %s235 = scalar_lea.sflag [#allocation3], %s234
        %s236 = sand.u32 %s31, 1
        %s237 = smul.addr %s236, 56
        %s238 = scalar_lea.vmem [#allocation2], %s237
        // Predicated region
        $region41: #{tpu_custom_call.1} parent=39 // pred_check
          %p239 = pneg %p44
        $region42: #{tpu_custom_call.1} parent=39 // pred_check_branch
          %241 = sbr.rel (%p239) target = $region44
        $region43: #{tpu_custom_call.1} parent=39 // pred_region
          %242 = dma.done %s235, 896
        $region44: #{tpu_custom_call.1} parent=39 // pred_fallthru
          _
        // Predicated region
        $region45: #{tpu_custom_call.1} parent=39 // pred_check
          %p243 = pneg %p65
        $region46: #{tpu_custom_call.1} parent=39 // pred_check_branch
          %245 = sbr.rel (%p243) target = $region48
        $region47: #{tpu_custom_call.1} parent=39 // pred_region
          %246 = dma.done [#allocation6], 6272
        $region48: #{tpu_custom_call.1} parent=39 // pred_fallthru
          _
        // Predicated region
        $region49: #{tpu_custom_call.1} parent=39 // pred_check
          %p247 = pneg %p107
        $region50: #{tpu_custom_call.1} parent=39 // pred_check_branch
          %249 = sbr.rel (%p247) target = $region52
        $region51: #{tpu_custom_call.1} parent=39 // pred_region
          %250 = dma.done [#allocation6], 1024
        $region52: #{tpu_custom_call.1} parent=39 // pred_fallthru
          _
        %s251 = sand.u32 %s31, 1
        %s252 = scalar_lea.sflag [#allocation3], %s251
        %s253 = sand.u32 %s31, 1
        %s254 = smul.addr %s253, 56
        %s255 = scalar_lea.vmem [#allocation2], %s254
        %p256 = pneg %p44
        %p257 = pneg %p41
        %p258 = pneg %p65
        %p259 = pneg %p62
        %p260 = pneg %p86
        %p261 = pneg %p83
        %p262 = pneg %p107
        %p263 = pneg %p104
        %p264 = pneg %p128
        %p265 = pneg %p125
        %p266 = pneg %p154
        %p267 = pneg %p151
        %s268 = sand.u32 %s141, 1
        %s269 = scalar_lea.sflag [#allocation4], %s268
        %s270 = sand.u32 %s141, 1
        %s271 = smul.addr %s270, 16
        %s272 = scalar_lea.vmem [#allocation8], %s271
        %s273 = smul.u32 2, %s23
        %s274 = smul.u32 2, %s23
        %v276 = vld [vmem:[%s238] sm:$0xff]
        %v277 = vld [vmem:[%s238 + $0x8] sm:$0xff]
        %v278 = vld [vmem:[%s238 + $0x10] sm:$0xff]
        %v279 = vld [vmem:[%s238 + $0x18] sm:$0xf]
        %v280 = vld [vmem:[%s238 + $0x1c] sm:$0xff]
        %v281 = vld [vmem:[%s238 + $0x24] sm:$0xff]
        %v282 = vld [vmem:[%s238 + $0x2c] sm:$0xff]
        %v283 = vld [vmem:[%s238 + $0x34] sm:$0xf]
        %v284 = vld [vmem:[#allocation5] sm:$0xf]
        %v285 = vld [vmem:[#allocation5 + $0x4] sm:$0xf]
        %v286 = vld [vmem:[#allocation5 + $0x8] sm:$0xf]
        %v287 = vld [vmem:[#allocation5 + $0xc] sm:$0xf]
        %v288 = vld [vmem:[#allocation5 + $0x10] sm:$0xf]
        %v289 = vld [vmem:[#allocation5 + $0x14] sm:$0xf]
        %v290 = vld [vmem:[#allocation5 + $0x18] sm:$0xf]
        %v291 = vld [vmem:[#allocation5 + $0x1c] sm:$0xf]
        %v292 = vld [vmem:[#allocation5 + $0x20] sm:$0xf]
        %v293 = vld [vmem:[#allocation5 + $0x24] sm:$0xf]
        %v294 = vld [vmem:[#allocation5 + $0x28] sm:$0xf]
        %v295 = vld [vmem:[#allocation5 + $0x2c] sm:$0xf]
        %v296 = vld [vmem:[#allocation5 + $0x30] sm:$0xf]
        %v297 = vld [vmem:[#allocation5 + $0x34] sm:$0xf]
        %v298 = vld [vmem:[#allocation5 + $0x38] sm:$0xf]
        %v299 = vld [vmem:[#allocation5 + $0x3c] sm:$0xf]
        %v300 = vld [vmem:[#allocation5 + $0x40] sm:$0xf]
        %v301 = vld [vmem:[#allocation5 + $0x44] sm:$0xf]
        %v302 = vld [vmem:[#allocation5 + $0x48] sm:$0xf]
        %v303 = vld [vmem:[#allocation5 + $0x4c] sm:$0xf]
        %v304 = vld [vmem:[#allocation5 + $0x50] sm:$0xf]
        %v305 = vld [vmem:[#allocation5 + $0x54] sm:$0xf]
        %v306 = vld [vmem:[#allocation5 + $0x58] sm:$0xf]
        %v307 = vld [vmem:[#allocation5 + $0x5c] sm:$0xf]
        %v308 = vld [vmem:[#allocation5 + $0x60] sm:$0xf]
        %v309 = vld [vmem:[#allocation5 + $0x64] sm:$0xf]
        %v310 = vld [vmem:[#allocation5 + $0x68] sm:$0xf]
        %v311 = vld [vmem:[#allocation5 + $0x6c] sm:$0xf]
        %v312 = vld [vmem:[#allocation5 + $0x70] sm:$0xf]
        %v313 = vld [vmem:[#allocation5 + $0x74] sm:$0xf]
        %v314 = vld [vmem:[#allocation5 + $0x78] sm:$0xf]
        %v315 = vld [vmem:[#allocation5 + $0x7c] sm:$0xf]
        %v316 = vld [vmem:[#allocation5 + $0x80] sm:$0xf]
        %v317 = vld [vmem:[#allocation5 + $0x84] sm:$0xf]
        %v318 = vld [vmem:[#allocation5 + $0x88] sm:$0xf]
        %v319 = vld [vmem:[#allocation5 + $0x8c] sm:$0xf]
        %v320 = vld [vmem:[#allocation5 + $0x90] sm:$0xf]
        %v321 = vld [vmem:[#allocation5 + $0x94] sm:$0xf]
        %v322 = vld [vmem:[#allocation5 + $0x98] sm:$0xf]
        %v323 = vld [vmem:[#allocation5 + $0x9c] sm:$0xf]
        %v324 = vld [vmem:[#allocation5 + $0xa0] sm:$0xf]
        %v325 = vld [vmem:[#allocation5 + $0xa4] sm:$0xf]
        %v326 = vld [vmem:[#allocation5 + $0xa8] sm:$0xf]
        %v327 = vld [vmem:[#allocation5 + $0xac] sm:$0xf]
        %v328 = vld [vmem:[#allocation5 + $0xb0] sm:$0xf]
        %v329 = vld [vmem:[#allocation5 + $0xb4] sm:$0xf]
        %v330 = vld [vmem:[#allocation5 + $0xb8] sm:$0xf]
        %v331 = vld [vmem:[#allocation5 + $0xbc] sm:$0xf]
        %v332 = vld [vmem:[#allocation5 + $0xc0] sm:$0xf]
        %v333 = vld [vmem:[#allocation5 + $0xc4] sm:$0xf]
        %v334 = vld [vmem:[#allocation5 + $0xc8] sm:$0xf]
        %v335 = vld [vmem:[#allocation5 + $0xcc] sm:$0xf]
        %v336 = vld [vmem:[#allocation5 + $0xd0] sm:$0xf]
        %v337 = vld [vmem:[#allocation5 + $0xd4] sm:$0xf]
        %v338 = vld [vmem:[#allocation5 + $0xd8] sm:$0xf]
        %v339 = vld [vmem:[#allocation5 + $0xdc] sm:$0xf]
        %v340 = vld [vmem:[#allocation5 + $0xe0] sm:$0xf]
        %v341 = vld [vmem:[#allocation5 + $0xe4] sm:$0xf]
        %v342 = vld [vmem:[#allocation5 + $0xe8] sm:$0xf]
        %v343 = vld [vmem:[#allocation5 + $0xec] sm:$0xf]
        %v344 = vld [vmem:[#allocation5 + $0xf0] sm:$0xf]
        %v345 = vld [vmem:[#allocation5 + $0xf4] sm:$0xf]
        %v346 = vld [vmem:[#allocation5 + $0xf8] sm:$0xf]
        %v347 = vld [vmem:[#allocation5 + $0xfc] sm:$0xf]
        %v348 = vld [vmem:[#allocation5 + $0x100] sm:$0xf]
        %v349 = vld [vmem:[#allocation5 + $0x104] sm:$0xf]
        %v350 = vld [vmem:[#allocation5 + $0x108] sm:$0xf]
        %v351 = vld [vmem:[#allocation5 + $0x10c] sm:$0xf]
        %v352 = vld [vmem:[#allocation5 + $0x110] sm:$0xf]
        %v353 = vld [vmem:[#allocation5 + $0x114] sm:$0xf]
        %v354 = vld [vmem:[#allocation5 + $0x118] sm:$0xf]
        %v355 = vld [vmem:[#allocation5 + $0x11c] sm:$0xf]
        %v356 = vld [vmem:[#allocation5 + $0x120] sm:$0xf]
        %v357 = vld [vmem:[#allocation5 + $0x124] sm:$0xf]
        %v358 = vld [vmem:[#allocation5 + $0x128] sm:$0xf]
        %v359 = vld [vmem:[#allocation5 + $0x12c] sm:$0xf]
        %v360 = vld [vmem:[#allocation5 + $0x130] sm:$0xf]
        %v361 = vld [vmem:[#allocation5 + $0x134] sm:$0xf]
        %v362 = vld [vmem:[#allocation5 + $0x138] sm:$0xf]
        %v363 = vld [vmem:[#allocation5 + $0x13c] sm:$0xf]
        %v364 = vld [vmem:[#allocation5 + $0x140] sm:$0xf]
        %v365 = vld [vmem:[#allocation5 + $0x144] sm:$0xf]
        %v366 = vld [vmem:[#allocation5 + $0x148] sm:$0xf]
        %v367 = vld [vmem:[#allocation5 + $0x14c] sm:$0xf]
        %v368 = vld [vmem:[#allocation5 + $0x150] sm:$0xf]
        %v369 = vld [vmem:[#allocation5 + $0x154] sm:$0xf]
        %v370 = vld [vmem:[#allocation5 + $0x158] sm:$0xf]
        %v371 = vld [vmem:[#allocation5 + $0x15c] sm:$0xf]
        %v372 = vld [vmem:[#allocation5 + $0x160] sm:$0xf]
        %v373 = vld [vmem:[#allocation5 + $0x164] sm:$0xf]
        %v374 = vld [vmem:[#allocation5 + $0x168] sm:$0xf]
        %v375 = vld [vmem:[#allocation5 + $0x16c] sm:$0xf]
        %v376 = vld [vmem:[#allocation5 + $0x170] sm:$0xf]
        %v377 = vld [vmem:[#allocation5 + $0x174] sm:$0xf]
        %v378 = vld [vmem:[#allocation5 + $0x178] sm:$0xf]
        %v379 = vld [vmem:[#allocation5 + $0x17c] sm:$0xf]
        %v380 = vld [vmem:[#allocation5 + $0x180] sm:$0xf]
        %v381 = vld [vmem:[#allocation5 + $0x184] sm:$0xf]
        %v382 = vld [vmem:[%s2] sm:$0x1]
        %v384 = vlaneseq
        %v385 = vshrl.u32 %v384, 7
        %v386 = vsub.s32 0, %v385
        %v387 = vrot.slane %v382, %v386
        %v397 = vunpack.c.l.b16 %v276
        %v398 = vunpack.c.h.b16 %v276
        %v399 = vunpack.c.l.b16 %v277
        %v400 = vunpack.c.h.b16 %v277
        %v401 = vunpack.c.l.b16 %v278
        %v402 = vunpack.c.h.b16 %v278
        %v403 = vunpack.c.l.b16 %v279
        %v404 = vunpack.c.l.b16 %v280
        %v405 = vunpack.c.h.b16 %v280
        %v406 = vunpack.c.l.b16 %v281
        %v407 = vunpack.c.h.b16 %v281
        %v408 = vunpack.c.l.b16 %v282
        %v409 = vunpack.c.h.b16 %v282
        %v410 = vunpack.c.l.b16 %v283
        %v411 = vpack.c.b16 %v404, %v397
        %v412 = vpack.c.b16 %v405, %v398
        %v413 = vpack.c.b16 %v406, %v399
        %v414 = vpack.c.b16 %v407, %v400
        %v415 = vpack.c.b16 %v408, %v401
        %v416 = vpack.c.b16 %v409, %v402
        %v417 = vpack.c.b16 %v410, %v403
        %v522 = vunpack.c.l.b16 %v284
        %v523 = vunpack.c.l.b16 %v285
        %v524 = vunpack.c.l.b16 %v286
        %v525 = vunpack.c.l.b16 %v287
        %v526 = vunpack.c.l.b16 %v288
        %v527 = vunpack.c.l.b16 %v289
        %v528 = vunpack.c.l.b16 %v290
        %v529 = vunpack.c.l.b16 %v291
        %v530 = vunpack.c.l.b16 %v292
        %v531 = vunpack.c.l.b16 %v293
        %v532 = vunpack.c.l.b16 %v294
        %v533 = vunpack.c.l.b16 %v295
        %v534 = vunpack.c.l.b16 %v296
        %v535 = vunpack.c.l.b16 %v297
        %v536 = vunpack.c.l.b16 %v298
        %v537 = vunpack.c.l.b16 %v299
        %v538 = vunpack.c.l.b16 %v300
        %v539 = vunpack.c.l.b16 %v301
        %v540 = vunpack.c.l.b16 %v302
        %v541 = vunpack.c.l.b16 %v303
        %v542 = vunpack.c.l.b16 %v304
        %v543 = vunpack.c.l.b16 %v305
        %v544 = vunpack.c.l.b16 %v306
        %v545 = vunpack.c.l.b16 %v307
        %v546 = vunpack.c.l.b16 %v308
        %v547 = vunpack.c.l.b16 %v309
        %v548 = vunpack.c.l.b16 %v310
        %v549 = vunpack.c.l.b16 %v311
        %v550 = vunpack.c.l.b16 %v312
        %v551 = vunpack.c.l.b16 %v313
        %v552 = vunpack.c.l.b16 %v314
        %v553 = vunpack.c.l.b16 %v315
        %v554 = vunpack.c.l.b16 %v316
        %v555 = vunpack.c.l.b16 %v317
        %v556 = vunpack.c.l.b16 %v318
        %v557 = vunpack.c.l.b16 %v319
        %v558 = vunpack.c.l.b16 %v320
        %v559 = vunpack.c.l.b16 %v321
        %v560 = vunpack.c.l.b16 %v322
        %v561 = vunpack.c.l.b16 %v323
        %v562 = vunpack.c.l.b16 %v324
        %v563 = vunpack.c.l.b16 %v325
        %v564 = vunpack.c.l.b16 %v326
        %v565 = vunpack.c.l.b16 %v327
        %v566 = vunpack.c.l.b16 %v328
        %v567 = vunpack.c.l.b16 %v329
        %v568 = vunpack.c.l.b16 %v330
        %v569 = vunpack.c.l.b16 %v331
        %v570 = vunpack.c.l.b16 %v332
        %v571 = vunpack.c.l.b16 %v333
        %v572 = vunpack.c.l.b16 %v334
        %v573 = vunpack.c.l.b16 %v335
        %v574 = vunpack.c.l.b16 %v336
        %v575 = vunpack.c.l.b16 %v337
        %v576 = vunpack.c.l.b16 %v338
        %v577 = vunpack.c.l.b16 %v339
        %v578 = vunpack.c.l.b16 %v340
        %v579 = vunpack.c.l.b16 %v341
        %v580 = vunpack.c.l.b16 %v342
        %v581 = vunpack.c.l.b16 %v343
        %v582 = vunpack.c.l.b16 %v344
        %v583 = vunpack.c.l.b16 %v345
        %v584 = vunpack.c.l.b16 %v346
        %v585 = vunpack.c.l.b16 %v347
        %v586 = vunpack.c.l.b16 %v348
        %v587 = vunpack.c.l.b16 %v349
        %v588 = vunpack.c.l.b16 %v350
        %v589 = vunpack.c.l.b16 %v351
        %v590 = vunpack.c.l.b16 %v352
        %v591 = vunpack.c.l.b16 %v353
        %v592 = vunpack.c.l.b16 %v354
        %v593 = vunpack.c.l.b16 %v355
        %v594 = vunpack.c.l.b16 %v356
        %v595 = vunpack.c.l.b16 %v357
        %v596 = vunpack.c.l.b16 %v358
        %v597 = vunpack.c.l.b16 %v359
        %v598 = vunpack.c.l.b16 %v360
        %v599 = vunpack.c.l.b16 %v361
        %v600 = vunpack.c.l.b16 %v362
        %v601 = vunpack.c.l.b16 %v363
        %v602 = vunpack.c.l.b16 %v364
        %v603 = vunpack.c.l.b16 %v365
        %v604 = vunpack.c.l.b16 %v366
        %v605 = vunpack.c.l.b16 %v367
        %v606 = vunpack.c.l.b16 %v368
        %v607 = vunpack.c.l.b16 %v369
        %v608 = vunpack.c.l.b16 %v370
        %v609 = vunpack.c.l.b16 %v371
        %v610 = vunpack.c.l.b16 %v372
        %v611 = vunpack.c.l.b16 %v373
        %v612 = vunpack.c.l.b16 %v374
        %v613 = vunpack.c.l.b16 %v375
        %v614 = vunpack.c.l.b16 %v376
        %v615 = vunpack.c.l.b16 %v377
        %v616 = vunpack.c.l.b16 %v378
        %v617 = vunpack.c.l.b16 %v379
        %v618 = vunpack.c.l.b16 %v380
        %v619 = vunpack.c.l.b16 %v381
        %v620 = vpack.c.b16 %v523, %v522
        %v621 = vpack.c.b16 %v525, %v524
        %v622 = vpack.c.b16 %v527, %v526
        %v623 = vpack.c.b16 %v529, %v528
        %v624 = vpack.c.b16 %v531, %v530
        %v625 = vpack.c.b16 %v533, %v532
        %v626 = vpack.c.b16 %v535, %v534
        %v627 = vpack.c.b16 %v537, %v536
        %v628 = vpack.c.b16 %v539, %v538
        %v629 = vpack.c.b16 %v541, %v540
        %v630 = vpack.c.b16 %v543, %v542
        %v631 = vpack.c.b16 %v545, %v544
        %v632 = vpack.c.b16 %v547, %v546
        %v633 = vpack.c.b16 %v549, %v548
        %v634 = vpack.c.b16 %v551, %v550
        %v635 = vpack.c.b16 %v553, %v552
        %v636 = vpack.c.b16 %v555, %v554
        %v637 = vpack.c.b16 %v557, %v556
        %v638 = vpack.c.b16 %v559, %v558
        %v639 = vpack.c.b16 %v561, %v560
        %v640 = vpack.c.b16 %v563, %v562
        %v641 = vpack.c.b16 %v565, %v564
        %v642 = vpack.c.b16 %v567, %v566
        %v643 = vpack.c.b16 %v569, %v568
        %v644 = vpack.c.b16 %v571, %v570
        %v645 = vpack.c.b16 %v573, %v572
        %v646 = vpack.c.b16 %v575, %v574
        %v647 = vpack.c.b16 %v577, %v576
        %v648 = vpack.c.b16 %v579, %v578
        %v649 = vpack.c.b16 %v581, %v580
        %v650 = vpack.c.b16 %v583, %v582
        %v651 = vpack.c.b16 %v585, %v584
        %v652 = vpack.c.b16 %v587, %v586
        %v653 = vpack.c.b16 %v589, %v588
        %v654 = vpack.c.b16 %v591, %v590
        %v655 = vpack.c.b16 %v593, %v592
        %v656 = vpack.c.b16 %v595, %v594
        %v657 = vpack.c.b16 %v597, %v596
        %v658 = vpack.c.b16 %v599, %v598
        %v659 = vpack.c.b16 %v601, %v600
        %v660 = vpack.c.b16 %v603, %v602
        %v661 = vpack.c.b16 %v605, %v604
        %v662 = vpack.c.b16 %v607, %v606
        %v663 = vpack.c.b16 %v609, %v608
        %v664 = vpack.c.b16 %v611, %v610
        %v665 = vpack.c.b16 %v613, %v612
        %v666 = vpack.c.b16 %v615, %v614
        %v667 = vpack.c.b16 %v617, %v616
        %v668 = vpack.c.b16 %v619, %v618
        %vm718 = vcmask 130048
        %v720 = vsel %vm718, %v417, 0
        %722 = vmatprep.subr.bf16.mxu0 0
        %723 = vmatpush1.bf16.msra.mxu0 %v620
        %724 = vmatprep.subr.bf16.mxu0 0
        %725 = vmatpush1.bf16.msra.mxu0 %v621
        %726 = vmatprep.subr.bf16.mxu0 0
        %727 = vmatpush1.bf16.msra.mxu0 %v622
        %728 = vmatprep.subr.bf16.mxu0 0
        %729 = vmatpush1.bf16.msra.mxu0 %v623
        %730 = vmatprep.subr.bf16.mxu0 0
        %731 = vmatpush1.bf16.msra.mxu0 %v624
        %732 = vmatprep.subr.bf16.mxu0 0
        %733 = vmatpush1.bf16.msra.mxu0 %v625
        %734 = vmatprep.subr.bf16.mxu0 0
        %735 = vmatpush1.bf16.msra.mxu0 %v626
        %736 = vmatprep.subr.bf16.mxu0 0
        %737 = vmatpush1.bf16.msra.mxu0 %v627
        %738 = vmatprep.subr.bf16.mxu0 0
        %739 = vmatpush1.bf16.msra.mxu0 %v628
        %740 = vmatprep.subr.bf16.mxu0 0
        %741 = vmatpush1.bf16.msra.mxu0 %v629
        %742 = vmatprep.subr.bf16.mxu0 0
        %743 = vmatpush1.bf16.msra.mxu0 %v630
        %744 = vmatprep.subr.bf16.mxu0 0
        %745 = vmatpush1.bf16.msra.mxu0 %v631
        %746 = vmatprep.subr.bf16.mxu0 0
        %747 = vmatpush1.bf16.msra.mxu0 %v632
        %748 = vmatprep.subr.bf16.mxu0 0
        %749 = vmatpush1.bf16.msra.mxu0 %v633
        %750 = vmatprep.subr.bf16.mxu0 0
        %751 = vmatpush1.bf16.msra.mxu0 %v634
        %752 = vmatprep.subr.bf16.mxu0 0
        %753 = vmatpush1.bf16.msra.mxu0 %v635
        %754 = vmatprep.mubr.bf16.mxu0 %v412
        %755 = vmatmul.mubr.bf16.gmra.mrb[0].mxu0 %v411
        %v756 = vpop.f32.mrb[0].mxu0
        %v757 = vadd.f32 %v387, %v756
        %v758 = vpop.f32.mrb[0].mxu0
        %v759 = vpop.f32.mrb[0].mxu0
        %v760 = vadd.f32 %v387, %v759
        %v761 = vpop.f32.mrb[0].mxu0
        %762 = vdwg.mxu0
        %763 = vmatprep.subr.bf16.mxu0 0
        %764 = vmatpush1.bf16.msra.mxu0 %v636
        %765 = vmatprep.subr.bf16.mxu0 0
        %766 = vmatpush1.bf16.msra.mxu0 %v637
        %767 = vmatprep.subr.bf16.mxu0 0
        %768 = vmatpush1.bf16.msra.mxu0 %v638
        %769 = vmatprep.subr.bf16.mxu0 0
        %770 = vmatpush1.bf16.msra.mxu0 %v639
        %771 = vmatprep.subr.bf16.mxu0 0
        %772 = vmatpush1.bf16.msra.mxu0 %v640
        %773 = vmatprep.subr.bf16.mxu0 0
        %774 = vmatpush1.bf16.msra.mxu0 %v641
        %775 = vmatprep.subr.bf16.mxu0 0
        %776 = vmatpush1.bf16.msra.mxu0 %v642
        %777 = vmatprep.subr.bf16.mxu0 0
        %778 = vmatpush1.bf16.msra.mxu0 %v643
        %779 = vmatprep.subr.bf16.mxu0 0
        %780 = vmatpush1.bf16.msra.mxu0 %v644
        %781 = vmatprep.subr.bf16.mxu0 0
        %782 = vmatpush1.bf16.msra.mxu0 %v645
        %783 = vmatprep.subr.bf16.mxu0 0
        %784 = vmatpush1.bf16.msra.mxu0 %v646
        %785 = vmatprep.subr.bf16.mxu0 0
        %786 = vmatpush1.bf16.msra.mxu0 %v647
        %787 = vmatprep.subr.bf16.mxu0 0
        %788 = vmatpush1.bf16.msra.mxu0 %v648
        %789 = vmatprep.subr.bf16.mxu0 0
        %790 = vmatpush1.bf16.msra.mxu0 %v649
        %791 = vmatprep.subr.bf16.mxu0 0
        %792 = vmatpush1.bf16.msra.mxu0 %v650
        %793 = vmatprep.subr.bf16.mxu0 0
        %794 = vmatpush1.bf16.msra.mxu0 %v651
        %795 = vmatprep.mubr.bf16.mxu0 %v414
        %796 = vmatmul.mubr.bf16.gmra.mrb[0].mxu0 %v413
        %v797 = vpop.f32.mrb[0].mxu0
        %v798 = vadd.f32 %v757, %v797
        %v799 = vpop.f32.mrb[0].mxu0
        %v800 = vpop.f32.mrb[0].mxu0
        %v801 = vadd.f32 %v760, %v800
        %v802 = vpop.f32.mrb[0].mxu0
        %803 = vdwg.mxu0
        %804 = vmatprep.subr.bf16.mxu0 0
        %805 = vmatpush1.bf16.msra.mxu0 %v652
        %806 = vmatprep.subr.bf16.mxu0 0
        %807 = vmatpush1.bf16.msra.mxu0 %v653
        %808 = vmatprep.subr.bf16.mxu0 0
        %809 = vmatpush1.bf16.msra.mxu0 %v654
        %810 = vmatprep.subr.bf16.mxu0 0
        %811 = vmatpush1.bf16.msra.mxu0 %v655
        %812 = vmatprep.subr.bf16.mxu0 0
        %813 = vmatpush1.bf16.msra.mxu0 %v656
        %814 = vmatprep.subr.bf16.mxu0 0
        %815 = vmatpush1.bf16.msra.mxu0 %v657
        %816 = vmatprep.subr.bf16.mxu0 0
        %817 = vmatpush1.bf16.msra.mxu0 %v658
        %818 = vmatprep.subr.bf16.mxu0 0
        %819 = vmatpush1.bf16.msra.mxu0 %v659
        %820 = vmatprep.subr.bf16.mxu0 0
        %821 = vmatpush1.bf16.msra.mxu0 %v660
        %822 = vmatprep.subr.bf16.mxu0 0
        %823 = vmatpush1.bf16.msra.mxu0 %v661
        %824 = vmatprep.subr.bf16.mxu0 0
        %825 = vmatpush1.bf16.msra.mxu0 %v662
        %826 = vmatprep.subr.bf16.mxu0 0
        %827 = vmatpush1.bf16.msra.mxu0 %v663
        %828 = vmatprep.subr.bf16.mxu0 0
        %829 = vmatpush1.bf16.msra.mxu0 %v664
        %830 = vmatprep.subr.bf16.mxu0 0
        %831 = vmatpush1.bf16.msra.mxu0 %v665
        %832 = vmatprep.subr.bf16.mxu0 0
        %833 = vmatpush1.bf16.msra.mxu0 %v666
        %834 = vmatprep.subr.bf16.mxu0 0
        %835 = vmatpush1.bf16.msra.mxu0 %v667
        %836 = vmatprep.mubr.bf16.mxu0 %v416
        %837 = vmatmul.mubr.bf16.gmra.mrb[0].mxu0 %v415
        %v838 = vpop.f32.mrb[0].mxu0
        %v839 = vadd.f32 %v798, %v838
        %v840 = vpop.f32.mrb[0].mxu0
        %v841 = vpop.f32.mrb[0].mxu0
        %v842 = vadd.f32 %v801, %v841
        %v843 = vpop.f32.mrb[0].mxu0
        %844 = vdwg.mxu0
        %845 = vmatprep.subr.bf16.mxu0 0
        %846 = vmatpush1.bf16.msra.mxu0 %v668
        %847 = vmatprep.subr.bf16.mxu0 0
        %848 = vmatpush1.bf16.msra.mxu0 0
        %849 = vmatprep.subr.bf16.mxu0 0
        %850 = vmatpush1.bf16.msra.mxu0 0
        %851 = vmatprep.subr.bf16.mxu0 0
        %852 = vmatpush1.bf16.msra.mxu0 0
        %853 = vmatprep.subr.bf16.mxu0 0
        %854 = vmatpush1.bf16.msra.mxu0 0
        %855 = vmatprep.subr.bf16.mxu0 0
        %856 = vmatpush1.bf16.msra.mxu0 0
        %857 = vmatprep.subr.bf16.mxu0 0
        %858 = vmatpush1.bf16.msra.mxu0 0
        %859 = vmatprep.subr.bf16.mxu0 0
        %860 = vmatpush1.bf16.msra.mxu0 0
        %861 = vmatprep.subr.bf16.mxu0 0
        %862 = vmatpush1.bf16.msra.mxu0 0
        %863 = vmatprep.subr.bf16.mxu0 0
        %864 = vmatpush1.bf16.msra.mxu0 0
        %865 = vmatprep.subr.bf16.mxu0 0
        %866 = vmatpush1.bf16.msra.mxu0 0
        %867 = vmatprep.subr.bf16.mxu0 0
        %868 = vmatpush1.bf16.msra.mxu0 0
        %869 = vmatprep.subr.bf16.mxu0 0
        %870 = vmatpush1.bf16.msra.mxu0 0
        %871 = vmatprep.subr.bf16.mxu0 0
        %872 = vmatpush1.bf16.msra.mxu0 0
        %873 = vmatprep.subr.bf16.mxu0 0
        %874 = vmatpush1.bf16.msra.mxu0 0
        %875 = vmatprep.subr.bf16.mxu0 0
        %876 = vmatpush1.bf16.msra.mxu0 0
        %877 = vmatprep.mubr.bf16.mxu0 0
        %878 = vmatmul.mubr.bf16.gmra.mrb[0].mxu0 %v720
        %v879 = vpop.f32.mrb[0].mxu0
        %v880 = vadd.f32 %v839, %v879
        %v881 = vpop.f32.mrb[0].mxu0
        %v882 = vpop.f32.mrb[0].mxu0
        %v883 = vadd.f32 %v842, %v882
        %v884 = vpop.f32.mrb[0].mxu0
        %885 = vdwg.mxu0
        %v886 = vxor.u32 %v880, 2147483648
        %v887 = vxor.u32 %v883, 2147483648
        %v888 = vmul.f32 %v886, 1.442695
        %v889 = vpow.pop %v888
        %v890 = vmul.f32 %v887, 1.442695
        %v891 = vpow.pop %v890
        %v892 = vadd.f32 %v889, 1.0
        %v893 = vadd.f32 %v891, 1.0
        %v894 = vrcp.pop %v892
        %v895 = vmul.f32 1.0, %v894
        %v896 = vrcp.pop %v893
        %v897 = vmul.f32 1.0, %v896
        %v898 = vpack.c.bf16 %v897, %v895
        %v899 = vld [vmem:[#allocation7] sm:$0xf]
        %v900 = vld [vmem:[#allocation7 + $0x4] sm:$0xf]
        %v901 = vld [vmem:[#allocation7 + $0x8] sm:$0xf]
        %v902 = vld [vmem:[#allocation7 + $0xc] sm:$0xf]
        %v903 = vld [vmem:[#allocation7 + $0x10] sm:$0xf]
        %v904 = vld [vmem:[#allocation7 + $0x14] sm:$0xf]
        %v905 = vld [vmem:[#allocation7 + $0x18] sm:$0xf]
        %v906 = vld [vmem:[#allocation7 + $0x1c] sm:$0xf]
        %v907 = vld [vmem:[#allocation7 + $0x20] sm:$0xf]
        %v908 = vld [vmem:[#allocation7 + $0x24] sm:$0xf]
        %v909 = vld [vmem:[#allocation7 + $0x28] sm:$0xf]
        %v910 = vld [vmem:[#allocation7 + $0x2c] sm:$0xf]
        %v911 = vld [vmem:[#allocation7 + $0x30] sm:$0xf]
        %v912 = vld [vmem:[#allocation7 + $0x34] sm:$0xf]
        %v913 = vld [vmem:[#allocation7 + $0x38] sm:$0xf]
        %v914 = vld [vmem:[#allocation7 + $0x3c] sm:$0xf]
        %v915 = vld [vmem:[%s4] sm:$0x1]
        %v917 = vlaneseq
        %v918 = vshrl.u32 %v917, 7
        %v919 = vsub.s32 0, %v918
        %v920 = vrot.slane %v915, %v919
        %v938 = vunpack.c.l.b16 %v899
        %v939 = vunpack.c.l.b16 %v900
        %v940 = vunpack.c.l.b16 %v901
        %v941 = vunpack.c.l.b16 %v902
        %v942 = vunpack.c.l.b16 %v903
        %v943 = vunpack.c.l.b16 %v904
        %v944 = vunpack.c.l.b16 %v905
        %v945 = vunpack.c.l.b16 %v906
        %v946 = vunpack.c.l.b16 %v907
        %v947 = vunpack.c.l.b16 %v908
        %v948 = vunpack.c.l.b16 %v909
        %v949 = vunpack.c.l.b16 %v910
        %v950 = vunpack.c.l.b16 %v911
        %v951 = vunpack.c.l.b16 %v912
        %v952 = vunpack.c.l.b16 %v913
        %v953 = vunpack.c.l.b16 %v914
        %v954 = vpack.c.b16 %v939, %v938
        %v955 = vpack.c.b16 %v941, %v940
        %v956 = vpack.c.b16 %v943, %v942
        %v957 = vpack.c.b16 %v945, %v944
        %v958 = vpack.c.b16 %v947, %v946
        %v959 = vpack.c.b16 %v949, %v948
        %v960 = vpack.c.b16 %v951, %v950
        %v961 = vpack.c.b16 %v953, %v952
        %970 = vmatprep.subr.bf16.mxu0 0
        %971 = vmatpush1.bf16.msra.mxu0 %v954
        %972 = vmatprep.subr.bf16.mxu0 0
        %973 = vmatpush1.bf16.msra.mxu0 %v955
        %974 = vmatprep.subr.bf16.mxu0 0
        %975 = vmatpush1.bf16.msra.mxu0 %v956
        %976 = vmatprep.subr.bf16.mxu0 0
        %977 = vmatpush1.bf16.msra.mxu0 %v957
        %978 = vmatprep.subr.bf16.mxu0 0
        %979 = vmatpush1.bf16.msra.mxu0 %v958
        %980 = vmatprep.subr.bf16.mxu0 0
        %981 = vmatpush1.bf16.msra.mxu0 %v959
        %982 = vmatprep.subr.bf16.mxu0 0
        %983 = vmatpush1.bf16.msra.mxu0 %v960
        %984 = vmatprep.subr.bf16.mxu0 0
        %985 = vmatpush1.bf16.msra.mxu0 %v961
        %986 = vmatprep.subr.bf16.mxu0 0
        %987 = vmatpush1.bf16.msra.mxu0 0
        %988 = vmatprep.subr.bf16.mxu0 0
        %989 = vmatpush1.bf16.msra.mxu0 0
        %990 = vmatprep.subr.bf16.mxu0 0
        %991 = vmatpush1.bf16.msra.mxu0 0
        %992 = vmatprep.subr.bf16.mxu0 0
        %993 = vmatpush1.bf16.msra.mxu0 0
        %994 = vmatprep.subr.bf16.mxu0 0
        %995 = vmatpush1.bf16.msra.mxu0 0
        %996 = vmatprep.subr.bf16.mxu0 0
        %997 = vmatpush1.bf16.msra.mxu0 0
        %998 = vmatprep.subr.bf16.mxu0 0
        %999 = vmatpush1.bf16.msra.mxu0 0
        %1000 = vmatprep.subr.bf16.mxu0 0
        %1001 = vmatpush1.bf16.msra.mxu0 0
        %1002 = vmatprep.mubr.bf16.mxu0 0
        %1003 = vmatmul.mubr.bf16.gmra.mrb[0].mxu0 %v898
        %v1004 = vpop.f32.mrb[0].mxu0
        %v1005 = vadd.f32 %v920, %v1004
        %v1006 = vpop.f32.mrb[0].mxu0
        %v1007 = vpop.f32.mrb[0].mxu0
        %v1008 = vadd.f32 %v920, %v1007
        %v1009 = vpop.f32.mrb[0].mxu0
        %1010 = vdwg.mxu0
        %1011 = vst [vmem:[%s272] sm:$0xff] %v1005
        %1012 = vst [vmem:[%s272 + $0x8] sm:$0xff] %v1008
        %s1013 = sand.u32 %s141, 1
        %s1014 = scalar_lea.sflag [#allocation4], %s1013
        %s1015 = sand.u32 %s141, 1
        %s1016 = smul.addr %s1015, 16
        %s1017 = scalar_lea.vmem [#allocation8], %s1016
        // Predicated region
        $region53: #{tpu_custom_call.1} parent=39 // pred_check
          %p1018 = pneg %p151
        $region54: #{tpu_custom_call.1} parent=39 // pred_check_branch
          %1020 = sbr.rel (%p1018) target = $region56
        $region55: #{tpu_custom_call.1} parent=39 // pred_region
          %s1021 = smul.u32 2, %s23
          %s1023 = ssub.s32 256, 256
          %1024 = vsyncadd %s1014, %s1023
          %s1025 = smul.addr %s1021, 128
          %s1026 = scalar_lea.hbm %s5, %s1025
          %s1027 = sshll.u32 %s1017, 4
          %s1028 = int_to_ptr.vmem [resolvable:$true] %s1027
          %1033 = dma.vmem_to_hbm [thread:$0]  %s1028, 256, %s1026, %s1014, 128, 128, 8
        $region56: #{tpu_custom_call.1} parent=39 // pred_fallthru
          _
      $region40: #{tpu_custom_call.1} parent=5 // pred_fallthru
        _
      %p1034 = scmp.le.s32.totalorder 2, %s18
      // Predicated region
      $region57: #{tpu_custom_call.1} parent=5 // pred_check
        %p1035 = pneg %p1034
      $region58: #{tpu_custom_call.1} parent=5 // pred_check_branch
        %1037 = sbr.rel (%p1035) target = $region60
      $region59: #{tpu_custom_call.1} parent=5 // pred_region
        %s1038 = ssub.s32 %s18, 2
        // Predicated region
        $region61: #{tpu_custom_call.1} parent=59 // pred_check
          %p1039 = pneg %p157
        $region62: #{tpu_custom_call.1} parent=59 // pred_check_branch
          %1041 = sbr.rel (%p1039) target = $region64
        $region63: #{tpu_custom_call.1} parent=59 // pred_region
          %s1042 = sand.u32 %s142, 1
          %s1043 = scalar_lea.sflag [#allocation4], %s1042
          %s1044 = sand.u32 %s142, 1
          %s1045 = smul.addr %s1044, 16
          %s1046 = scalar_lea.vmem [#allocation8], %s1045
          %1047 = dma.done %s1043, 256
        $region64: #{tpu_custom_call.1} parent=59 // pred_fallthru
          _
      $region60: #{tpu_custom_call.1} parent=5 // pred_fallthru
        _
    $region6: #{tpu_custom_call.1} parent=1 // loop_footer
      %s22 = sadd.s32 1, %s18
    $region7: #{tpu_custom_call.1} parent=1 // loop_footer_branch
      %17 = sbr.rel target = $region3
    $region8: #{tpu_custom_call.1} parent=1 // loop_exit
      _
    %1048 = vsyncpa [#allocation3], 1
    %s1049 = scalar_lea.sflag [#allocation3], 1
    %1050 = vsyncpa %s1049, 1
    %1051 = vsyncpa [#allocation6], 1
    %1052 = vsyncpa [#allocation4], 1
    %s1053 = scalar_lea.sflag [#allocation4], 1
    %1054 = vsyncpa %s1053, 1

</llo_original>
